<compile_context>
chip_gen: v7x
topology: tpu7x:2x2x1
jax: 0.10.0
libtpu: 0.0.40
codegen_flags: <defaults>
</compile_context>

<pallas_src>
import functools

import jax
import jax.numpy as jnp
from jax import lax
from jax.experimental import pallas as pl
from jax.experimental.pallas import tpu as pltpu


# ----------------------------------------------------------------------------------
# Generation-aware sizing helpers
# ----------------------------------------------------------------------------------
@functools.lru_cache(maxsize=None)
def _vmem_capacity_bytes():
    try:
        cap = int(getattr(pltpu.get_tpu_info(), "vmem_capacity_bytes", 0) or 0)
        if cap > 0:
            return cap
    except Exception:
        pass
    return 64 * 1024 * 1024  # conservative (v7x-sized) fallback


def _vmem_budgets(kind):
    """(per-step tile budget, base vmem_limit, physical capacity)."""
    cap = _vmem_capacity_bytes()
    if cap >= 100 * (1 << 20):          # v5e / v6e: 128 MiB physical VMEM
        base = 64 << 20
        budget = (8 << 20) if kind == "pool" else (24 << 20)
    else:                                # v7x: 64 MiB physical VMEM
        base = 32 << 20
        budget = (4 << 20) if kind == "pool" else (12 << 20)
    return budget, base, cap


def _limit(base, need, cap):
    return int(min(max(base, need + (8 << 20)), int(cap * 0.9)))


def _sublane(dtype):
    # rows per sublane group: 8 for 32-bit, 16 for bf16, 32 for int8/fp8
    return {4: 8, 2: 16, 1: 32}.get(jnp.dtype(dtype).itemsize, 8)


def _pick_tile(total, valid, bytes_fn, budget, prefer_multi=False):
    """Largest divisor of `total` passing `valid` and fitting `budget`."""
    cands = [d for d in range(1, total + 1) if total % d == 0 and valid(d)]
    fitting = [d for d in cands if bytes_fn(d) <= budget]
    if not fitting:
        return min(cands)        # vmem_limit is bumped by the caller in this case
    if prefer_multi:             # keep >= 2 grid steps so both v7x TCs get work
        multi = [d for d in fitting if total // d >= 2]
        if multi:
            return max(multi)
    return max(fitting)


# ----------------------------------------------------------------------------------
# use_conv=False : 2x2 stride-2 average pool (NCHW end-to-end, no wrapper HBM passes)
# ----------------------------------------------------------------------------------
def _avgpool_kernel(x_ref, p_ref, o_ref):
    # x_ref: (R, g*2W) grouped input rows; p_ref: (g*2W, g*Wo) resident selection matrix
    o_ref[...] = jnp.dot(x_ref[...], p_ref[...],
                         preferred_element_type=jnp.float32).astype(o_ref.dtype)


def downsample_avgpool(x_nchw):
    """Downsample(use_conv=False, dims=2)."""
    N, C, H, W = x_nchw.shape
    assert H % 2 == 0 and W % 2 == 0, "odd spatial sizes unsupported"
    # TODO(synk): PyTorch's AvgPool2d floors odd spatial sizes; not handled here.
    Ho, Wo = H // 2, W // 2
    T = N * C * Ho
    dtype = x_nchw.dtype
    itemsize = jnp.dtype(dtype).itemsize
    sub = _sublane(dtype)

    # Group g output rows per stored row so the stored last dim is lane-dense.
    divs = [d for d in range(1, T + 1) if T % d == 0]
    g = next((d for d in divs if (d * Wo) % 128 == 0), None)
    if g is None:
        g = next((d for d in divs if d * Wo >= 128), T)
    T2 = T // g
    win, wout = g * 2 * W, g * Wo
    p_bytes = win * wout * itemsize

    budget, base_limit, cap = _vmem_budgets("pool")

    def pool_bytes(r):
        return 2 * r * (win + wout) * itemsize + p_bytes + (1 << 20)

    R = _pick_tile(T2, lambda d: d % sub == 0 or d == T2, pool_bytes, budget,
                   prefer_multi=True)

    # Block-diagonal 2x2-average selection matrix: built once, resident in VMEM.
    q = jnp.arange(win, dtype=jnp.int32)[:, None]
    c = jnp.arange(wout, dtype=jnp.int32)[None, :]
    qq = q % (2 * W)
    j2 = 2 * (c % Wo)
    hit = (q // (2 * W) == c // Wo) & (
        (qq == j2) | (qq == j2 + 1) | (qq == W + j2) | (qq == W + j2 + 1))
    p = jnp.where(hit, 0.25, 0.0).astype(dtype)

    xf = x_nchw.reshape(T2, win)                      # free: row-major regrouping
    out = pl.pallas_call(
        _avgpool_kernel,
        out_shape=jax.ShapeDtypeStruct((T2, wout), dtype),
        grid=(T2 // R,),
        in_specs=[pl.BlockSpec((R, win), lambda i: (i, 0)),
                  pl.BlockSpec((win, wout), lambda i: (0, 0))],   # resident
        out_specs=pl.BlockSpec((R, wout), lambda i: (i, 0)),
        compiler_params=pltpu.CompilerParams(
            dimension_semantics=("parallel",),
            vmem_limit_bytes=_limit(base_limit, pool_bytes(R), cap)),
        cost_estimate=pl.CostEstimate(
            flops=2 * T2 * win * wout, transcendentals=0,
            bytes_accessed=(T * 2 * W + T * Wo + win * wout) * itemsize),
    )(xf, p)
    return out.reshape(N, C, Ho, Wo)                  # free


# ----------------------------------------------------------------------------------
# use_conv=True : 3x3 stride-2 conv, padding=1
# ----------------------------------------------------------------------------------
def _conv3x3_s2_kernel(x_ref, w_ref, b_ref, o_ref, carry_ref, *,
                       tHo, Wo, C, tCout, n_cj, fuse, mm_dtype):
    # x_ref    : (1, 2, tHo, Wo+1, 2C)  [:,0]=even input rows, [:,1]=odd input rows,
    #                                   lane index = colparity*C + channel
    # w_ref    : (9C, tCout)            rows ordered (ky, kx, ci)
    # b_ref    : (1, tCout)
    # o_ref    : (1, tCout, tHo*Wo)     NCHW-flat output tile
    # carry_ref: (1, Wo+1, 2C)          last (odd) input row of the previous row tile
    ti = pl.program_id(1)
    cj = pl.program_id(2)

    @pl.when(ti == 0)
    def _():  # top halo of the first row tile is the padding=1 zero row
        carry_ref[...] = jnp.zeros_like(carry_ref)

    x = x_ref[0]                                      # (2, tHo, Wo+1, 2C)
    even_rows = x[0]                                  # input rows 2r   -> ky = 1
    odd_rows = x[1]                                   # input rows 2r+1 -> ky = 2
    top = carry_ref[...]                              # input row 2*ti*tHo - 1

    @pl.when(cj == n_cj - 1)                          # keep halo valid across inner cj
    def _():
        carry_ref[...] = x[1, tHo - 1:tHo]            # next tile's top halo

    if tHo > 1:                                       # input rows 2r - 1 -> ky = 0
        plane0 = jnp.concatenate([top, odd_rows[:tHo - 1]], axis=0)
    else:
        plane0 = top
    planes = (plane0, even_rows, odd_rows)            # ky = 0, 1, 2

    m = tHo * Wo

    def taps(plane):
        if mm_dtype is not None:
            plane = plane.astype(mm_dtype)
        t01 = plane[:, 0:Wo, :].reshape(m, 2 * C)     # kx = 0, 1 (lane-packed pair)
        t2 = plane[:, 1:Wo + 1, 0:C].reshape(m, C)    # kx = 2
        return t01, t2

    if fuse:
        parts = []
        for ky in range(3):
            t01, t2 = taps(planes[ky])
            parts += [t01, t2]
        rhs = jnp.concatenate(parts, axis=1)          # (m, 9C), matches (ky,kx,ci) rows
        acc = jnp.dot(rhs, w_ref[...], preferred_element_type=jnp.float32)
    else:
        acc = jnp.zeros((m, tCout), jnp.float32)
        for ky in range(3):
            t01, t2 = taps(planes[ky])
            acc = acc + jnp.dot(t01, w_ref[ky * 3 * C:ky * 3 * C + 2 * C],
                                preferred_element_type=jnp.float32)
            acc = acc + jnp.dot(t2, w_ref[ky * 3 * C + 2 * C:(ky + 1) * 3 * C],
                                preferred_element_type=jnp.float32)

    acc = acc + b_ref[...].astype(jnp.float32)        # (1, tCout) broadcasts
    o_ref[0] = jnp.transpose(acc.astype(o_ref.dtype))  # cast BEFORE the XLU transpose


def downsample_conv(x_nchw, w_hwio, b, matmul_dtype=None):
    """Downsample(use_conv=True, dims=2, padding=1).

    x_nchw: (N, C, H, W);  w_hwio: (3, 3, C, Cout);  b: (Cout,)
    matmul_dtype: optionally cast matmul operands (e.g. jnp.bfloat16); f32 accumulation.
    """
    N, C, H, W = x_nchw.shape
    assert H % 2 == 0 and W % 2 == 0, "odd spatial sizes unsupported"
    # TODO(synk): PyTorch's stride-2 conv with padding=1 also supports odd H/W.
    Ho, Wo = H // 2, W // 2
    Cout = w_hwio.shape[-1]
    dtype = x_nchw.dtype
    itemsize = jnp.dtype(dtype).itemsize
    sub = _sublane(dtype)

    # Single fused wrapper pass: pad W (padding=1), split rows by parity and pack the
    # column parity into the lane dim -> (N, 2, Ho, Wo+1, 2C).  H is NOT padded; the
    # top halo row comes from the kernel's VMEM carry.
    xw = (jnp.pad(x_nchw, ((0, 0), (0, 0), (0, 0), (1, 1)))
          .reshape(N, C, Ho, 2, Wo + 1, 2)
          .transpose(0, 3, 2, 4, 5, 1)
          .reshape(N, 2, Ho, Wo + 1, 2 * C))
    w2 = w_hwio.reshape(9 * C, Cout)                  # rows ordered (ky, kx, ci)
    b2 = b.reshape(1, Cout)
    if matmul_dtype is not None:
        w2 = w2.astype(matmul_dtype)

    # Cout tiling (lane-dense; full if it fits, else a 128-multiple divisor).
    if Cout <= 256:
        tCout = Cout
    else:
        cands = [d for d in (256, 128) if Cout % d == 0]
        tCout = cands[0] if cands else Cout
    n_cj = Cout // tCout

    fuse = (9 * C <= 768)                             # fat single matmul for small C
    budget, base_limit, cap = _vmem_budgets("conv")
    lane = -(-2 * C // 128) * 128
    subw = -(-(Wo + 1) // sub) * sub
    wpad = 9 * C * max(-(-tCout // 128) * 128, 128) * itemsize

    def conv_bytes(tho):
        m = tho * Wo
        mpad = -(-m // 128) * 128
        xblk = 2 * (2 * tho * subw * lane) * itemsize         # double-buffered input
        plane0 = tho * subw * lane * itemsize                 # ky=0 shifted plane
        rhs = m * (-(-9 * C // 128) * 128) * itemsize         # gathered matmul operand
        acc = m * max(-(-tCout // 128) * 128, 128) * 4        # f32 accumulator
        outb = 3 * tCout * mpad * itemsize                    # transpose + dbl-buf out
        return xblk + plane0 + rhs + acc + outb + 2 * wpad + (2 << 20)

    # Row tile: divides Ho and keeps the output block lane-dense.
    tHo = _pick_tile(Ho, lambda d: (d * Wo) % 128 == 0 or d == Ho, conv_bytes, budget)
    n_ti = Ho // tHo

    kernel = functools.partial(
        _conv3x3_s2_kernel, tHo=tHo, Wo=Wo, C=C, tCout=tCout, n_cj=n_cj,
        fuse=fuse, mm_dtype=matmul_dtype)

    out = pl.pallas_call(
        kernel,
        out_shape=jax.ShapeDtypeStruct((N, Cout, Ho * Wo), dtype),
        grid=(N, n_ti, n_cj),           # cj innermost: activations DMA'd from HBM once
        in_specs=[
            pl.BlockSpec((1, 2, tHo, Wo + 1, 2 * C),
                         lambda n, ti, cj: (n, 0, ti, 0, 0)),
            pl.BlockSpec((9 * C, tCout), lambda n, ti, cj: (0, cj)),
            pl.BlockSpec((1, tCout), lambda n, ti, cj: (0, cj)),
        ],
        out_specs=pl.BlockSpec((1, tCout, tHo * Wo), lambda n, ti, cj: (n, cj, ti)),
        scratch_shapes=[pltpu.VMEM((1, Wo + 1, 2 * C), dtype)],
        compiler_params=pltpu.CompilerParams(
            dimension_semantics=("parallel", "arbitrary", "arbitrary"),
            vmem_limit_bytes=_limit(base_limit, conv_bytes(tHo), cap)),
        cost_estimate=pl.CostEstimate(
            flops=2 * N * Ho * Wo * 9 * C * Cout, transcendentals=0,
            bytes_accessed=(N * C * H * W + 9 * C * Cout + Cout
                            + N * Cout * Ho * Wo) * itemsize),
    )(xw, w2, b2)
    return out.reshape(N, Cout, Ho, Wo)               # free


def downsample(x_nchw, use_conv, w_hwio=None, b=None):
    """Forward pass of `Downsample` for dims=2."""
    if use_conv:
        return downsample_conv(x_nchw, w_hwio, b)
    return downsample_avgpool(x_nchw)


# ----------------------------------------------------------------------------------
if __name__ == "__main__":
    key = jax.random.PRNGKey(0)
    kx_, kw_, kb_ = jax.random.split(key, 3)

    N, C, H, W = 2, 4, 16, 16
    Cout = 8  # out_channels for the conv branch

    x = jax.random.normal(kx_, (N, C, H, W), dtype=jnp.float32)
    w = jax.random.normal(kw_, (3, 3, C, Cout), dtype=jnp.float32) * 0.1  # HWIO
    b = jax.random.normal(kb_, (Cout,), dtype=jnp.float32) * 0.1

    # ---- use_conv=True branch ----
    y_conv = jax.block_until_ready(downsample(x, True, w, b))
    ref_conv = lax.conv_general_dilated(
        x,
        jnp.transpose(w, (3, 2, 0, 1)),                      # HWIO -> OIHW
        window_strides=(2, 2),
        padding=((1, 1), (1, 1)),
        dimension_numbers=("NCHW", "OIHW", "NCHW"),
    ) + b.reshape(1, Cout, 1, 1)
    assert y_conv.shape == (N, Cout, H // 2, W // 2)
    assert jnp.allclose(y_conv, ref_conv, atol=1e-4, rtol=1e-4), \
        float(jnp.max(jnp.abs(y_conv - ref_conv)))

    # ---- use_conv=False branch (channels == out_channels) ----
    y_pool = jax.block_until_ready(downsample(x, False))
    ref_pool = x.reshape(N, C, H // 2, 2, W // 2, 2).mean(axis=(3, 5))
    assert y_pool.shape == (N, C, H // 2, W // 2)
    assert jnp.allclose(y_pool, ref_pool, atol=1e-5, rtol=1e-5)

    print("KERNEL_OK")
</pallas_src>

<mosaic_0001>
module attributes {stable_mosaic.version = 11 : i64} {
  func.func @_conv3x3_s2_kernel(%arg0: i32, %arg1: i32, %arg2: i32, %arg3: memref<1x2x8x9x8xf32, #tpu.memory_space<vmem>>, %arg4: memref<36x8xf32, #tpu.memory_space<vmem>>, %arg5: memref<1x8xf32, #tpu.memory_space<vmem>>, %arg6: memref<1x8x64xf32, #tpu.memory_space<vmem>>, %arg7: memref<1x9x8xf32, #tpu.memory_space<vmem>>) attributes {dimension_semantics = [#tpu.dimension_semantics<parallel>, #tpu.dimension_semantics<arbitrary>, #tpu.dimension_semantics<arbitrary>], iteration_bounds = array<i64: 2, 1, 1>, scalar_prefetch = 0 : i64, scratch_operands = 1 : i64, tpu.core_type = #tpu.core_type<tc>, window_params = [{transform_indices = @transform_0, window_bounds = array<i64: 1, 2, 8, 9, 8>}, {transform_indices = @transform_1, window_bounds = array<i64: 36, 8>}, {transform_indices = @transform_2, window_bounds = array<i64: 1, 8>}, {transform_indices = @transform_3, window_bounds = array<i64: 1, 8, 64>}]} {
    %c0_i32 = arith.constant 0 : i32
    %0 = arith.cmpi eq, %arg1, %c0_i32 : i32
    %1 = arith.extui %0 : i1 to i32
    %c0_i32_0 = arith.constant 0 : i32
    %2 = arith.cmpi ne, %1, %c0_i32_0 : i32
    scf.if %2 {
      %cst_17 = arith.constant 0.000000e+00 : f32
      %37 = vector.broadcast %cst_17 : f32 to vector<1x9x8xf32>
      %c0_18 = arith.constant 0 : index
      %c0_19 = arith.constant 0 : index
      %c0_20 = arith.constant 0 : index
      %38 = vector.load %arg7[%c0_18, %c0_19, %c0_20] : memref<1x9x8xf32, #tpu.memory_space<vmem>>, vector<1x9x8xf32>
      tpu.vector_store %arg7[%c0_18, %c0_19, %c0_20], %37 {strides = array<i32>} : memref<1x9x8xf32, #tpu.memory_space<vmem>>, vector<1x9x8xf32>,
    } else {
    }
    %c0 = arith.constant 0 : index
    %c0_1 = arith.constant 0 : index
    %c0_2 = arith.constant 0 : index
    %c0_3 = arith.constant 0 : index
    %c0_4 = arith.constant 0 : index
    %3 = vector.load %arg3[%c0, %c0_1, %c0_2, %c0_3, %c0_4] : memref<1x2x8x9x8xf32, #tpu.memory_space<vmem>>, vector<1x2x8x9x8xf32>
    %4 = vector.shape_cast %3 : vector<1x2x8x9x8xf32> to vector<2x8x9x8xf32>
    %5 = vector.extract_strided_slice %4 {offsets = [0, 0, 0, 0], sizes = [1, 8, 9, 8], strides = [1, 1, 1, 1]} : vector<2x8x9x8xf32> to vector<1x8x9x8xf32>
    %6 = vector.shape_cast %5 : vector<1x8x9x8xf32> to vector<8x9x8xf32>
    %7 = vector.extract_strided_slice %4 {offsets = [1, 0, 0, 0], sizes = [1, 8, 9, 8], strides = [1, 1, 1, 1]} : vector<2x8x9x8xf32> to vector<1x8x9x8xf32>
    %8 = vector.shape_cast %7 : vector<1x8x9x8xf32> to vector<8x9x8xf32>
    %c0_5 = arith.constant 0 : index
    %c0_6 = arith.constant 0 : index
    %c0_7 = arith.constant 0 : index
    %9 = vector.load %arg7[%c0_5, %c0_6, %c0_7] : memref<1x9x8xf32, #tpu.memory_space<vmem>>, vector<1x9x8xf32>
    %c0_i32_8 = arith.constant 0 : i32
    %10 = arith.cmpi eq, %arg2, %c0_i32_8 : i32
    %11 = arith.extui %10 : i1 to i32
    %c0_i32_9 = arith.constant 0 : i32
    %12 = arith.cmpi ne, %11, %c0_i32_9 : i32
    scf.if %12 {
      %37 = vector.extract_strided_slice %4 {offsets = [1, 7, 0, 0], sizes = [1, 1, 9, 8], strides = [1, 1, 1, 1]} : vector<2x8x9x8xf32> to vector<1x1x9x8xf32>
      %38 = vector.shape_cast %37 : vector<1x1x9x8xf32> to vector<1x9x8xf32>
      %c0_17 = arith.constant 0 : index
      %c0_18 = arith.constant 0 : index
      %c0_19 = arith.constant 0 : index
      %39 = vector.load %arg7[%c0_17, %c0_18, %c0_19] : memref<1x9x8xf32, #tpu.memory_space<vmem>>, vector<1x9x8xf32>
      tpu.vector_store %arg7[%c0_17, %c0_18, %c0_19], %38 {strides = array<i32>} : memref<1x9x8xf32, #tpu.memory_space<vmem>>, vector<1x9x8xf32>,
    } else {
    }
    %13 = vector.extract_strided_slice %8 {offsets = [0, 0, 0], sizes = [7, 9, 8], strides = [1, 1, 1]} : vector<8x9x8xf32> to vector<7x9x8xf32>
    %14 = tpu.concatenate %9, %13 in 0 : vector<1x9x8xf32>, vector<7x9x8xf32> -> vector<8x9x8xf32>
    %15 = vector.extract_strided_slice %14 {offsets = [0, 0, 0], sizes = [8, 8, 8], strides = [1, 1, 1]} : vector<8x9x8xf32> to vector<8x8x8xf32>
    %16 = vector.shape_cast %15 : vector<8x8x8xf32> to vector<64x8xf32>
    %17 = vector.extract_strided_slice %14 {offsets = [0, 1, 0], sizes = [8, 8, 4], strides = [1, 1, 1]} : vector<8x9x8xf32> to vector<8x8x4xf32>
    %18 = vector.shape_cast %17 : vector<8x8x4xf32> to vector<64x4xf32>
    %19 = vector.extract_strided_slice %6 {offsets = [0, 0, 0], sizes = [8, 8, 8], strides = [1, 1, 1]} : vector<8x9x8xf32> to vector<8x8x8xf32>
    %20 = vector.shape_cast %19 : vector<8x8x8xf32> to vector<64x8xf32>
    %21 = vector.extract_strided_slice %6 {offsets = [0, 1, 0], sizes = [8, 8, 4], strides = [1, 1, 1]} : vector<8x9x8xf32> to vector<8x8x4xf32>
    %22 = vector.shape_cast %21 : vector<8x8x4xf32> to vector<64x4xf32>
    %23 = vector.extract_strided_slice %8 {offsets = [0, 0, 0], sizes = [8, 8, 8], strides = [1, 1, 1]} : vector<8x9x8xf32> to vector<8x8x8xf32>
    %24 = vector.shape_cast %23 : vector<8x8x8xf32> to vector<64x8xf32>
    %25 = vector.extract_strided_slice %8 {offsets = [0, 1, 0], sizes = [8, 8, 4], strides = [1, 1, 1]} : vector<8x9x8xf32> to vector<8x8x4xf32>
    %26 = vector.shape_cast %25 : vector<8x8x4xf32> to vector<64x4xf32>
    %27 = tpu.concatenate %16, %18, %20, %22, %24, %26 in 1 : vector<64x8xf32>, vector<64x4xf32>, vector<64x8xf32>, vector<64x4xf32>, vector<64x8xf32>, vector<64x4xf32> -> vector<64x36xf32>
    %c0_10 = arith.constant 0 : index
    %c0_11 = arith.constant 0 : index
    %28 = vector.load %arg4[%c0_10, %c0_11] : memref<36x8xf32, #tpu.memory_space<vmem>>, vector<36x8xf32>
    %cst = arith.constant dense<0.000000e+00> : vector<64x8xf32>
    %29 = tpu.matmul %27, %28, %cst {dimension_numbers = #tpu.dot_dimension_numbers<[1], [0], [0], [1], [0, 0, 1, 1], [], []>} : vector<64x36xf32>, vector<36x8xf32>, vector<64x8xf32> -> vector<64x8xf32>
    %c0_12 = arith.constant 0 : index
    %c0_13 = arith.constant 0 : index
    %30 = vector.load %arg5[%c0_12, %c0_13] : memref<1x8xf32, #tpu.memory_space<vmem>>, vector<1x8xf32>
    %31 = vector.broadcast %30 : vector<1x8xf32> to vector<64x8xf32>
    %32 = arith.addf %29, %31 : vector<64x8xf32>
    %33 = tpu.transpose %32, [1, 0] : vector<64x8xf32> -> vector<8x64xf32>
    %c0_14 = arith.constant 0 : index
    %c0_15 = arith.constant 0 : index
    %c0_16 = arith.constant 0 : index
    %34 = vector.load %arg6[%c0_14, %c0_15, %c0_16] : memref<1x8x64xf32, #tpu.memory_space<vmem>>, vector<1x8x64xf32>
    %35 = vector.shape_cast %34 : vector<1x8x64xf32> to vector<8x64xf32>
    %36 = vector.shape_cast %33 : vector<8x64xf32> to vector<1x8x64xf32>
    tpu.vector_store %arg6[%c0_14, %c0_15, %c0_16], %36 {strides = array<i32>} : memref<1x8x64xf32, #tpu.memory_space<vmem>>, vector<1x8x64xf32>,
    return
  }
  func.func @transform_0(%arg0: i32, %arg1: i32, %arg2: i32) -> (i32, i32, i32, i32, i32) {
    %c0_i32 = arith.constant 0 : i32
    %c0_i32_0 = arith.constant 0 : i32
    %c0_i32_1 = arith.constant 0 : i32
    %c0_i32_2 = arith.constant 0 : i32
    return %arg0, %c0_i32, %arg1, %c0_i32_0, %c0_i32_1 : i32, i32, i32, i32, i32
  }
  func.func @transform_1(%arg0: i32, %arg1: i32, %arg2: i32) -> (i32, i32) {
    %c0_i32 = arith.constant 0 : i32
    %c0_i32_0 = arith.constant 0 : i32
    return %c0_i32, %arg2 : i32, i32
  }
  func.func @transform_2(%arg0: i32, %arg1: i32, %arg2: i32) -> (i32, i32) {
    %c0_i32 = arith.constant 0 : i32
    %c0_i32_0 = arith.constant 0 : i32
    return %c0_i32, %arg2 : i32, i32
  }
  func.func @transform_3(%arg0: i32, %arg1: i32, %arg2: i32) -> (i32, i32, i32) {
    %c0_i32 = arith.constant 0 : i32
    return %arg0, %arg2, %arg1 : i32, i32, i32
  }
}

</mosaic_0001>

<llo_original>
// kernel: tpu_custom_call.1
$region0: #{tpu_custom_call.1}
  #allocation0 [shape = 'u32[]', space=smem, size = 0x4, offset = 0x4, fixed_abs, tag = 'smem constant byte address 0x4 - core index']
  #allocation1 [shape = 'u32[144,128]{1,0:T(1,128)}', space=vmem, size = 0x12000, scoped, tag = 'internal scratch']
  #allocation2 [shape = 'f32[1,9,8]{2,1,0:T(8,128)}', space=vmem, size = 0x2000, scoped, tag = 'scratch operand']
  %s0 = inlined_call_operand.vmem [shape: f32[2,2,8,9,8], index: 0, kind: input, shape index: {}]
  %s1 = inlined_call_operand.vmem [shape: f32[36,8], index: 1, kind: input, shape index: {}]
  %s2 = inlined_call_operand.vmem [shape: f32[1,8], index: 2, kind: input, shape index: {}]
  %s3 = inlined_call_operand.hbm [shape: f32[2,8,64], index: 3, kind: output, shape index: {}]
  %s4 = sld [smem:[#allocation0]]
  $region53: #{tpu_custom_call.1} parent=0
    _
  %s6 = ssub.s32 1, %s4
  %s7 = scalar_select 0, %s6, %s4
  $region1: #{tpu_custom_call.1} parent=0
    #allocation3 [shape = 'u8[8192]{0}', space=vmem, size = 0x2000, scoped, tag = 'output window, operand 0']
    #allocation4 [shape = 's32[2]{0}', space=sflag, size = 0x8, scoped, tag = 'scoped memory for tpu_custom_call.1']
    %8 = vsyncpa [#allocation4], 0
    %s9 = scalar_lea.sflag [#allocation4], 1
    %10 = vsyncpa %s9, 0
    loop: start=0, step=1, limit=4
    $region2: #{tpu_custom_call.1} parent=1 // loop_pre_header
      _
    $region3: #{tpu_custom_call.1} parent=1 // loop_header
      %s12 = sphi 0, %s16
      %p13 = scmp.ge.s32.totalorder %s12, 4
      %s19 = sphi 0, %s38
      %s20 = sphi 0, %s34
      %s21 = sphi 0, %s30
      %s22 = sphi 0, %s19
      %s23 = sphi 0, %s20
      %s24 = sphi 0, %s21
      %s25 = sphi 0, %s22
      %s26 = sphi 0, %s23
      %s27 = sphi 0, %s24
      %s43 = sphi 0, %s45
      %s46 = sphi 0, %s43
      %s47 = sphi 0, %s46
      %s63 = sphi 0, %s47
      %s69 = sphi 0, %s71
      %s72 = sphi 0, %s69
      %s73 = sphi 0, %s72
      %s89 = sphi 0, %s73
      %s95 = sphi 0, %s97
      %s98 = sphi 0, %s95
      %s99 = sphi 0, %s98
      %s115 = sphi 0, %s99
      %s125 = sphi 0, %s127
      %s128 = sphi 0, %s125
      %s129 = sphi 0, %s128
      %s145 = sphi 0, %s129
    $region4: #{tpu_custom_call.1} parent=1 // loop_header_branch
      %15 = sbr.rel (%p13) target = $region8
    $region5: #{tpu_custom_call.1} parent=1 // loop_body
      %s17 = ssub.s32 %s12, 1
      %s18 = ssub.s32 %s12, 2
      %s28 = sadd.s32 1, %s21
      %p29 = scmp.ge.s32.totalorder %s28, 1
      %s30 = scalar_select %p29, 0, %s28
      %s31 = sadd.s32 1, %s20
      %s32 = scalar_select %p29, %s31, %s20
      %p33 = scmp.ge.s32.totalorder %s32, 1
      %s34 = scalar_select %p33, 0, %s32
      %s35 = sadd.s32 1, %s19
      %s36 = scalar_select %p33, %s35, %s19
      %p37 = scmp.ge.s32.totalorder %s36, 2
      %s38 = scalar_select %p37, 0, %s36
      %s39 = ssub.s32 %s19, %s38
      %s40 = ssub.s32 %s20, %s34
      %s41 = sor.u32 %s39, %s40
      %p42 = scmp.eq.s32.totalorder %s41, 0
      %s44 = sadd.s32 %s43, 1
      %s45 = scalar_select %p42, %s43, %s44
      %p48 = pneg %p42
      %p49 = scmp.eq.s32.totalorder %s12, 1
      %p50 = por %p48, %p49
      %p51 = scmp.ne.s32.totalorder %s43, %s46
      %p52 = scmp.eq.s32.totalorder %s12, 0
      %p53 = por %p51, %p52
      %p54 = scmp.ne.s32.totalorder %s43, %s46
      %p55 = scmp.eq.s32.totalorder %s17, 1
      %p56 = por %p54, %p55
      %p57 = scmp.ne.s32.totalorder %s46, %s47
      %p58 = scmp.eq.s32.totalorder %s17, 0
      %p59 = por %p57, %p58
      %p60 = scmp.ne.s32.totalorder %s46, %s47
      %p61 = scmp.eq.s32.totalorder %s18, 1
      %p62 = por %p60, %p61
      %p64 = scmp.ne.s32.totalorder %s47, %s63
      %p65 = scmp.eq.s32.totalorder %s18, 0
      %p66 = por %p64, %p65
      %s67 = ssub.s32 %s21, %s30
      %p68 = scmp.eq.s32.totalorder %s67, 0
      %s70 = sadd.s32 %s69, 1
      %s71 = scalar_select %p68, %s69, %s70
      %p74 = pneg %p68
      %p75 = scmp.eq.s32.totalorder %s12, 1
      %p76 = por %p74, %p75
      %p77 = scmp.ne.s32.totalorder %s69, %s72
      %p78 = scmp.eq.s32.totalorder %s12, 0
      %p79 = por %p77, %p78
      %p80 = scmp.ne.s32.totalorder %s69, %s72
      %p81 = scmp.eq.s32.totalorder %s17, 1
      %p82 = por %p80, %p81
      %p83 = scmp.ne.s32.totalorder %s72, %s73
      %p84 = scmp.eq.s32.totalorder %s17, 0
      %p85 = por %p83, %p84
      %p86 = scmp.ne.s32.totalorder %s72, %s73
      %p87 = scmp.eq.s32.totalorder %s18, 1
      %p88 = por %p86, %p87
      %p90 = scmp.ne.s32.totalorder %s73, %s89
      %p91 = scmp.eq.s32.totalorder %s18, 0
      %p92 = por %p90, %p91
      %s93 = ssub.s32 %s21, %s30
      %p94 = scmp.eq.s32.totalorder %s93, 0
      %s96 = sadd.s32 %s95, 1
      %s97 = scalar_select %p94, %s95, %s96
      %p100 = pneg %p94
      %p101 = scmp.eq.s32.totalorder %s12, 1
      %p102 = por %p100, %p101
      %p103 = scmp.ne.s32.totalorder %s95, %s98
      %p104 = scmp.eq.s32.totalorder %s12, 0
      %p105 = por %p103, %p104
      %p106 = scmp.ne.s32.totalorder %s95, %s98
      %p107 = scmp.eq.s32.totalorder %s17, 1
      %p108 = por %p106, %p107
      %p109 = scmp.ne.s32.totalorder %s98, %s99
      %p110 = scmp.eq.s32.totalorder %s17, 0
      %p111 = por %p109, %p110
      %p112 = scmp.ne.s32.totalorder %s98, %s99
      %p113 = scmp.eq.s32.totalorder %s18, 1
      %p114 = por %p112, %p113
      %p116 = scmp.ne.s32.totalorder %s99, %s115
      %p117 = scmp.eq.s32.totalorder %s18, 0
      %p118 = por %p116, %p117
      %s119 = ssub.s32 %s19, %s38
      %s120 = ssub.s32 %s21, %s30
      %s121 = sor.u32 %s119, %s120
      %s122 = ssub.s32 %s20, %s34
      %s123 = sor.u32 %s121, %s122
      %p124 = scmp.eq.s32.totalorder %s123, 0
      %s126 = sadd.s32 %s125, 1
      %s127 = scalar_select %p124, %s125, %s126
      %p130 = pneg %p124
      %p131 = scmp.eq.s32.totalorder %s12, 1
      %p132 = por %p130, %p131
      %p133 = scmp.ne.s32.totalorder %s125, %s128
      %p134 = scmp.eq.s32.totalorder %s12, 0
      %p135 = por %p133, %p134
      %p136 = scmp.ne.s32.totalorder %s125, %s128
      %p137 = scmp.eq.s32.totalorder %s17, 1
      %p138 = por %p136, %p137
      %p139 = scmp.ne.s32.totalorder %s128, %s129
      %p140 = scmp.eq.s32.totalorder %s17, 0
      %p141 = por %p139, %p140
      %p142 = scmp.ne.s32.totalorder %s128, %s129
      %p143 = scmp.eq.s32.totalorder %s18, 1
      %p144 = por %p142, %p143
      %p146 = scmp.ne.s32.totalorder %s129, %s145
      %p147 = scmp.eq.s32.totalorder %s18, 0
      %p148 = por %p146, %p147
      %p149 = scmp.le.s32.totalorder 1, %s12
      %p150 = scmp.lt.s32.totalorder %s12, 3
      %p151 = pnand %p149, %p150
      %p152 = pneg %p151
      // Predicated region
      $region9: #{tpu_custom_call.1} parent=5 // pred_check
        _
      $region10: #{tpu_custom_call.1} parent=5 // pred_check_branch
        %154 = sbr.rel (%p151) target = $region12
      $region11: #{tpu_custom_call.1} parent=5 // pred_region
        %s155 = ssub.s32 %s12, 1
        // Predicated region
        $region13: #{tpu_custom_call.1} parent=11 // pred_check
          %p156 = pneg %p85
        $region14: #{tpu_custom_call.1} parent=11 // pred_check_branch
          %158 = sbr.rel (%p156) target = $region16
        $region15: #{tpu_custom_call.1} parent=11 // pred_region
          %p159 = scmp.lt.s32.totalorder %s24, 0
          %s160 = scalar_select %p159, %s24, 0
          %s161 = smul.addr %s160, 8
          %s162 = scalar_lea.vmem %s1, %s161
        $region16: #{tpu_custom_call.1} parent=11 // pred_fallthru
          _
        // Predicated region
        $region17: #{tpu_custom_call.1} parent=11 // pred_check
          %p163 = pneg %p111
        $region18: #{tpu_custom_call.1} parent=11 // pred_check_branch
          %165 = sbr.rel (%p163) target = $region20
        $region19: #{tpu_custom_call.1} parent=11 // pred_region
          %p166 = scmp.lt.s32.totalorder %s24, 0
          %s167 = scalar_select %p166, %s24, 0
          %s168 = scalar_lea.vmem %s2, %s167
        $region20: #{tpu_custom_call.1} parent=11 // pred_fallthru
          _
      $region12: #{tpu_custom_call.1} parent=5 // pred_fallthru
        _
      %p169 = scmp.lt.s32.totalorder %s12, 2
      // Predicated region
      $region21: #{tpu_custom_call.1} parent=5 // pred_check
        %p170 = pneg %p169
      $region22: #{tpu_custom_call.1} parent=5 // pred_check_branch
        %172 = sbr.rel (%p170) target = $region24
      $region23: #{tpu_custom_call.1} parent=5 // pred_region
        // Predicated region
        $region25: #{tpu_custom_call.1} parent=23 // pred_check
          %p173 = pneg %p53
        $region26: #{tpu_custom_call.1} parent=23 // pred_check_branch
          %175 = sbr.rel (%p173) target = $region28
        $region27: #{tpu_custom_call.1} parent=23 // pred_region
          %s176 = smul.u32 8, %s20
          %p177 = scmp.lt.s32.totalorder %s19, 1
          %s178 = scalar_select %p177, %s19, 1
          %p179 = scmp.lt.s32.totalorder %s176, 7
          %s180 = scalar_select %p179, %s176, 7
          %s181 = smul.addr %s180, 2
          %s182 = smul.addr %s178, 32
          %s183 = sadd.s32 %s181, %s182
          %s184 = smul.addr %s183, 8
          %s185 = scalar_lea.vmem %s0, %s184
          %s186 = smul.u32 8, %s20
        $region28: #{tpu_custom_call.1} parent=23 // pred_fallthru
          _
      $region24: #{tpu_custom_call.1} parent=5 // pred_fallthru
        _
      %p187 = scmp.le.s32.totalorder 1, %s12
      %p188 = scmp.lt.s32.totalorder %s12, 3
      %p189 = pnand %p187, %p188
      %p190 = pneg %p189
      // Predicated region
      $region29: #{tpu_custom_call.1} parent=5 // pred_check
        _
      $region30: #{tpu_custom_call.1} parent=5 // pred_check_branch
        %192 = sbr.rel (%p189) target = $region32
      $region31: #{tpu_custom_call.1} parent=5 // pred_region
        %s193 = ssub.s32 %s12, 1
        %s194 = smul.u32 8, %s23
        %p195 = scmp.lt.s32.totalorder %s22, 1
        %s196 = scalar_select %p195, %s22, 1
        %p197 = scmp.lt.s32.totalorder %s194, 7
        %s198 = scalar_select %p197, %s194, 7
        %s199 = smul.addr %s198, 2
        %s200 = smul.addr %s196, 32
        %s201 = sadd.s32 %s199, %s200
        %s202 = smul.addr %s201, 8
        %s203 = scalar_lea.vmem %s0, %s202
        %p204 = pneg %p59
        %p205 = pneg %p56
        %p206 = scmp.lt.s32.totalorder %s24, 0
        %s207 = scalar_select %p206, %s24, 0
        %s208 = smul.addr %s207, 8
        %s209 = scalar_lea.vmem %s1, %s208
        %p210 = pneg %p85
        %p211 = pneg %p82
        %p212 = scmp.lt.s32.totalorder %s24, 0
        %s213 = scalar_select %p212, %s24, 0
        %s214 = scalar_lea.vmem %s2, %s213
        %p215 = pneg %p111
        %p216 = pneg %p108
        %p217 = pneg %p141
        %p218 = pneg %p138
        %s219 = sand.u32 %s128, 1
        %s220 = scalar_lea.sflag [#allocation4], %s219
        %s221 = sand.u32 %s128, 1
        %s222 = smul.addr %s221, 8
        %s223 = scalar_lea.vmem [#allocation3], %s222
        %s224 = smul.u32 8, %s23
        %p225 = scmp.lt.s32.totalorder %s22, 1
        %s226 = scalar_select %p225, %s22, 1
        %p227 = scmp.lt.s32.totalorder %s224, 7
        %s228 = scalar_select %p227, %s224, 7
        %s229 = smul.addr %s228, 2
        %s230 = smul.addr %s226, 32
        %s231 = sadd.s32 %s229, %s230
        %s232 = smul.addr %s231, 8
        %s233 = scalar_lea.vmem %s0, %s232
        %s234 = smul.u32 8, %s23
        %p235 = scmp.lt.s32.totalorder %s24, 0
        %s236 = scalar_select %p235, %s24, 0
        %s237 = smul.addr %s236, 8
        %s238 = scalar_lea.vmem %s1, %s237
        %p239 = scmp.lt.s32.totalorder %s24, 0
        %s240 = scalar_select %p239, %s24, 0
        %s241 = scalar_lea.vmem %s2, %s240
        %p242 = scmp.eq.s32.totalorder %s23, 0
        // Predicated region
        $region33: #{tpu_custom_call.1} parent=31 // pred_check
          %p243 = pneg %p242
        $region34: #{tpu_custom_call.1} parent=31 // pred_check_branch
          %245 = sbr.rel (%p243) target = $region36
        $region35: #{tpu_custom_call.1} parent=31 // pred_region
          %vm246 = vcmask 64512
          %247 = vst.msk [vmem:[#allocation2] sm:$0xff] %vm246, 0.0
          %vm248 = vcmask 57344
          %249 = vst.msk [vmem:[#allocation2 + $0x8] sm:$0x1] %vm248, 0.0
        $region36: #{tpu_custom_call.1} parent=31 // pred_fallthru
          _
        %v250 = vld [vmem:[%s233] sm:$0xff]
        %v251 = vld [vmem:[%s233 + $0x8] sm:$0x1]
        %v252 = vld [vmem:[%s233 + $0x10] sm:$0xff]
        %v253 = vld [vmem:[%s233 + $0x18] sm:$0x1]
        %v254 = vld [vmem:[%s233 + $0x20] sm:$0xff]
        %v255 = vld [vmem:[%s233 + $0x28] sm:$0x1]
        %v256 = vld [vmem:[%s233 + $0x30] sm:$0xff]
        %v257 = vld [vmem:[%s233 + $0x38] sm:$0x1]
        %v258 = vld [vmem:[%s233 + $0x40] sm:$0xff]
        %v259 = vld [vmem:[%s233 + $0x48] sm:$0x1]
        %v260 = vld [vmem:[%s233 + $0x50] sm:$0xff]
        %v261 = vld [vmem:[%s233 + $0x58] sm:$0x1]
        %v262 = vld [vmem:[%s233 + $0x60] sm:$0xff]
        %v263 = vld [vmem:[%s233 + $0x68] sm:$0x1]
        %v264 = vld [vmem:[%s233 + $0x70] sm:$0xff]
        %v265 = vld [vmem:[%s233 + $0x78] sm:$0x1]
        %v266 = vld [vmem:[%s233 + $0x80] sm:$0xff]
        %v267 = vld [vmem:[%s233 + $0x88] sm:$0x1]
        %v268 = vld [vmem:[%s233 + $0x90] sm:$0xff]
        %v269 = vld [vmem:[%s233 + $0x98] sm:$0x1]
        %v270 = vld [vmem:[%s233 + $0xa0] sm:$0xff]
        %v271 = vld [vmem:[%s233 + $0xa8] sm:$0x1]
        %v272 = vld [vmem:[%s233 + $0xb0] sm:$0xff]
        %v273 = vld [vmem:[%s233 + $0xb8] sm:$0x1]
        %v274 = vld [vmem:[%s233 + $0xc0] sm:$0xff]
        %v275 = vld [vmem:[%s233 + $0xc8] sm:$0x1]
        %v276 = vld [vmem:[%s233 + $0xd0] sm:$0xff]
        %v277 = vld [vmem:[%s233 + $0xd8] sm:$0x1]
        %v278 = vld [vmem:[%s233 + $0xe0] sm:$0xff]
        %v279 = vld [vmem:[%s233 + $0xe8] sm:$0x1]
        %v280 = vld [vmem:[%s233 + $0xf0] sm:$0xff]
        %v281 = vld [vmem:[%s233 + $0xf8] sm:$0x1]
        %v282 = vld [vmem:[#allocation2] sm:$0xff]
        %v283 = vld [vmem:[#allocation2 + $0x8] sm:$0x1]
        %p284 = scmp.eq.s32.totalorder %s24, 0
        // Predicated region
        $region37: #{tpu_custom_call.1} parent=31 // pred_check
          %p285 = pneg %p284
        $region38: #{tpu_custom_call.1} parent=31 // pred_check_branch
          %287 = sbr.rel (%p285) target = $region40
        $region39: #{tpu_custom_call.1} parent=31 // pred_region
          %vm288 = vcmask 64512
          %289 = vst.msk [vmem:[#allocation2] sm:$0xff] %vm288, %v280
          %vm290 = vcmask 57344
          %291 = vst.msk [vmem:[#allocation2 + $0x8] sm:$0x1] %vm290, %v281
        $region40: #{tpu_custom_call.1} parent=31 // pred_fallthru
          _
        %vm308 = vcmask 1046528
        %v309 = vrot.slane %v282, 1
        %v310 = vrot.slane %v283, 1
        %v311 = vsel %vm308, %v309, %v310
        %v312 = vrot.slane %v266, 1
        %v313 = vrot.slane %v267, 1
        %v314 = vsel %vm308, %v312, %v313
        %v315 = vrot.slane %v268, 1
        %v316 = vrot.slane %v269, 1
        %v317 = vsel %vm308, %v315, %v316
        %v318 = vrot.slane %v270, 1
        %v319 = vrot.slane %v271, 1
        %v320 = vsel %vm308, %v318, %v319
        %v321 = vrot.slane %v272, 1
        %v322 = vrot.slane %v273, 1
        %v323 = vsel %vm308, %v321, %v322
        %v324 = vrot.slane %v274, 1
        %v325 = vrot.slane %v275, 1
        %v326 = vsel %vm308, %v324, %v325
        %v327 = vrot.slane %v276, 1
        %v328 = vrot.slane %v277, 1
        %v329 = vsel %vm308, %v327, %v328
        %v330 = vrot.slane %v278, 1
        %v331 = vrot.slane %v279, 1
        %v332 = vsel %vm308, %v330, %v331
        %v349 = vrot.slane %v250, 1
        %v350 = vrot.slane %v251, 1
        %v351 = vsel %vm308, %v349, %v350
        %v352 = vrot.slane %v252, 1
        %v353 = vrot.slane %v253, 1
        %v354 = vsel %vm308, %v352, %v353
        %v355 = vrot.slane %v254, 1
        %v356 = vrot.slane %v255, 1
        %v357 = vsel %vm308, %v355, %v356
        %v358 = vrot.slane %v256, 1
        %v359 = vrot.slane %v257, 1
        %v360 = vsel %vm308, %v358, %v359
        %v361 = vrot.slane %v258, 1
        %v362 = vrot.slane %v259, 1
        %v363 = vsel %vm308, %v361, %v362
        %v364 = vrot.slane %v260, 1
        %v365 = vrot.slane %v261, 1
        %v366 = vsel %vm308, %v364, %v365
        %v367 = vrot.slane %v262, 1
        %v368 = vrot.slane %v263, 1
        %v369 = vsel %vm308, %v367, %v368
        %v370 = vrot.slane %v264, 1
        %v371 = vrot.slane %v265, 1
        %v372 = vsel %vm308, %v370, %v371
        %v375 = vrot.slane %v280, 1
        %v376 = vrot.slane %v281, 1
        %v377 = vsel %vm308, %v375, %v376
        %378 = vrot.lane.b32.xlu0 %v311, 8
        %v379 = vpop.permute.xlu0 %378
        %380 = vrot.lane.b32.xlu0 %v314, 8
        %v381 = vpop.permute.xlu0 %380
        %382 = vrot.lane.b32.xlu0 %v317, 8
        %v383 = vpop.permute.xlu0 %382
        %384 = vrot.lane.b32.xlu0 %v320, 8
        %v385 = vpop.permute.xlu0 %384
        %386 = vrot.lane.b32.xlu0 %v323, 8
        %v387 = vpop.permute.xlu0 %386
        %388 = vrot.lane.b32.xlu0 %v326, 8
        %v389 = vpop.permute.xlu0 %388
        %390 = vrot.lane.b32.xlu0 %v329, 8
        %v391 = vpop.permute.xlu0 %390
        %392 = vrot.lane.b32.xlu0 %v332, 8
        %v393 = vpop.permute.xlu0 %392
        %402 = vrot.lane.b32.xlu0 %v250, 12
        %v403 = vpop.permute.xlu0 %402
        %404 = vrot.lane.b32.xlu0 %v252, 12
        %v405 = vpop.permute.xlu0 %404
        %406 = vrot.lane.b32.xlu0 %v254, 12
        %v407 = vpop.permute.xlu0 %406
        %408 = vrot.lane.b32.xlu0 %v256, 12
        %v409 = vpop.permute.xlu0 %408
        %410 = vrot.lane.b32.xlu0 %v258, 12
        %v411 = vpop.permute.xlu0 %410
        %412 = vrot.lane.b32.xlu0 %v260, 12
        %v413 = vpop.permute.xlu0 %412
        %414 = vrot.lane.b32.xlu0 %v262, 12
        %v415 = vpop.permute.xlu0 %414
        %416 = vrot.lane.b32.xlu0 %v264, 12
        %v417 = vpop.permute.xlu0 %416
        %426 = vrot.lane.b32.xlu0 %v351, 20
        %v427 = vpop.permute.xlu0 %426
        %428 = vrot.lane.b32.xlu0 %v354, 20
        %v429 = vpop.permute.xlu0 %428
        %430 = vrot.lane.b32.xlu0 %v357, 20
        %v431 = vpop.permute.xlu0 %430
        %432 = vrot.lane.b32.xlu0 %v360, 20
        %v433 = vpop.permute.xlu0 %432
        %434 = vrot.lane.b32.xlu0 %v363, 20
        %v435 = vpop.permute.xlu0 %434
        %436 = vrot.lane.b32.xlu0 %v366, 20
        %v437 = vpop.permute.xlu0 %436
        %438 = vrot.lane.b32.xlu0 %v369, 20
        %v439 = vpop.permute.xlu0 %438
        %440 = vrot.lane.b32.xlu0 %v372, 20
        %v441 = vpop.permute.xlu0 %440
        %450 = vrot.lane.b32.xlu0 %v266, 24
        %v451 = vpop.permute.xlu0 %450
        %452 = vrot.lane.b32.xlu0 %v268, 24
        %v453 = vpop.permute.xlu0 %452
        %454 = vrot.lane.b32.xlu0 %v270, 24
        %v455 = vpop.permute.xlu0 %454
        %456 = vrot.lane.b32.xlu0 %v272, 24
        %v457 = vpop.permute.xlu0 %456
        %458 = vrot.lane.b32.xlu0 %v274, 24
        %v459 = vpop.permute.xlu0 %458
        %460 = vrot.lane.b32.xlu0 %v276, 24
        %v461 = vpop.permute.xlu0 %460
        %462 = vrot.lane.b32.xlu0 %v278, 24
        %v463 = vpop.permute.xlu0 %462
        %464 = vrot.lane.b32.xlu0 %v280, 24
        %v465 = vpop.permute.xlu0 %464
        %474 = vrot.lane.b32.xlu0 %v314, 32
        %v475 = vpop.permute.xlu0 %474
        %476 = vrot.lane.b32.xlu0 %v317, 32
        %v477 = vpop.permute.xlu0 %476
        %478 = vrot.lane.b32.xlu0 %v320, 32
        %v479 = vpop.permute.xlu0 %478
        %480 = vrot.lane.b32.xlu0 %v323, 32
        %v481 = vpop.permute.xlu0 %480
        %482 = vrot.lane.b32.xlu0 %v326, 32
        %v483 = vpop.permute.xlu0 %482
        %484 = vrot.lane.b32.xlu0 %v329, 32
        %v485 = vpop.permute.xlu0 %484
        %486 = vrot.lane.b32.xlu0 %v332, 32
        %v487 = vpop.permute.xlu0 %486
        %488 = vrot.lane.b32.xlu0 %v377, 32
        %v489 = vpop.permute.xlu0 %488
        %vm498 = vcmask 64512
        %v499 = vsel %vm498, %v282, %v379
        %v500 = vsel %vm498, %v266, %v381
        %v501 = vsel %vm498, %v268, %v383
        %v502 = vsel %vm498, %v270, %v385
        %v503 = vsel %vm498, %v272, %v387
        %v504 = vsel %vm498, %v274, %v389
        %v505 = vsel %vm498, %v276, %v391
        %v506 = vsel %vm498, %v278, %v393
        %vm507 = vcmask 97280
        %v508 = vsel %vm507, %v499, %v403
        %v509 = vsel %vm507, %v500, %v405
        %v510 = vsel %vm507, %v501, %v407
        %v511 = vsel %vm507, %v502, %v409
        %v512 = vsel %vm507, %v503, %v411
        %v513 = vsel %vm507, %v504, %v413
        %v514 = vsel %vm507, %v505, %v415
        %v515 = vsel %vm507, %v506, %v417
        %vm516 = vcmask 162816
        %v517 = vsel %vm516, %v508, %v427
        %v518 = vsel %vm516, %v509, %v429
        %v519 = vsel %vm516, %v510, %v431
        %v520 = vsel %vm516, %v511, %v433
        %v521 = vsel %vm516, %v512, %v435
        %v522 = vsel %vm516, %v513, %v437
        %v523 = vsel %vm516, %v514, %v439
        %v524 = vsel %vm516, %v515, %v441
        %vm525 = vcmask 195584
        %v526 = vsel %vm525, %v517, %v451
        %v527 = vsel %vm525, %v518, %v453
        %v528 = vsel %vm525, %v519, %v455
        %v529 = vsel %vm525, %v520, %v457
        %v530 = vsel %vm525, %v521, %v459
        %v531 = vsel %vm525, %v522, %v461
        %v532 = vsel %vm525, %v523, %v463
        %v533 = vsel %vm525, %v524, %v465
        %vm534 = vcmask 261120
        %v535 = vsel %vm534, %v526, %v475
        %v536 = vsel %vm534, %v527, %v477
        %v537 = vsel %vm534, %v528, %v479
        %v538 = vsel %vm534, %v529, %v481
        %v539 = vsel %vm534, %v530, %v483
        %v540 = vsel %vm534, %v531, %v485
        %v541 = vsel %vm534, %v532, %v487
        %v542 = vsel %vm534, %v533, %v489
        %v543 = vld [vmem:[%s238] sm:$0xff]
        %v544 = vld [vmem:[%s238 + $0x8] sm:$0xff]
        %v545 = vld [vmem:[%s238 + $0x10] sm:$0xff]
        %v546 = vld [vmem:[%s238 + $0x18] sm:$0xff]
        %v547 = vld [vmem:[%s238 + $0x20] sm:$0xf]
        %v548 = vld [vmem:[%s241] sm:$0x1]
        %v550 = vlaneseq
        %v551 = vshrl.u32 %v550, 7
        %v552 = vsub.s32 0, %v551
        %v553 = vrot.slane %v548, %v552
        %vm555 = vcmask 293888
        %v557 = vsel %vm555, %v535, 0
        %v560 = vsel %vm555, %v536, 0
        %v563 = vsel %vm555, %v537, 0
        %v566 = vsel %vm555, %v538, 0
        %v569 = vsel %vm555, %v539, 0
        %v572 = vsel %vm555, %v540, 0
        %v575 = vsel %vm555, %v541, 0
        %v578 = vsel %vm555, %v542, 0
        %vm580 = vcmask 1043456
        %v582 = vsel %vm580, %v547, 0
        %584 = vmatprep.subr.mxu0 0.0
        %585 = vmatpush1.msra.mxu0 %v543
        %586 = vmatprep.subr.mxu0 0.0
        %587 = vmatpush1.msra.mxu0 %v544
        %588 = vmatprep.subr.mxu0 0.0
        %589 = vmatpush1.msra.mxu0 %v545
        %590 = vmatprep.subr.mxu0 0.0
        %591 = vmatpush1.msra.mxu0 %v546
        %592 = vmatprep.subr.mxu0 0.0
        %593 = vmatpush1.msra.mxu0 %v582
        %594 = vmatprep.subr.mxu0 0.0
        %595 = vmatpush1.msra.mxu0 0.0
        %596 = vmatprep.subr.mxu0 0.0
        %597 = vmatpush1.msra.mxu0 0.0
        %598 = vmatprep.subr.mxu0 0.0
        %599 = vmatpush1.msra.mxu0 0.0
        %600 = vmatprep.subr.mxu0 0.0
        %601 = vmatpush1.msra.mxu0 0.0
        %602 = vmatprep.subr.mxu0 0.0
        %603 = vmatpush1.msra.mxu0 0.0
        %604 = vmatprep.subr.mxu0 0.0
        %605 = vmatpush1.msra.mxu0 0.0
        %606 = vmatprep.subr.mxu0 0.0
        %607 = vmatpush1.msra.mxu0 0.0
        %608 = vmatprep.subr.mxu0 0.0
        %609 = vmatpush1.msra.mxu0 0.0
        %610 = vmatprep.subr.mxu0 0.0
        %611 = vmatpush1.msra.mxu0 0.0
        %612 = vmatprep.subr.mxu0 0.0
        %613 = vmatpush1.msra.mxu0 0.0
        %614 = vmatprep.subr.mxu0 0.0
        %615 = vmatpush1.msra.mxu0 0.0
        %616 = vmatprep.subr.mxu0 0.0
        %617 = vmatpush1.msra.mxu0 0.0
        %618 = vmatprep.subr.mxu0 0.0
        %619 = vmatpush1.msra.mxu0 0.0
        %620 = vmatprep.subr.mxu0 0.0
        %621 = vmatpush1.msra.mxu0 0.0
        %622 = vmatprep.subr.mxu0 0.0
        %623 = vmatpush1.msra.mxu0 0.0
        %624 = vmatprep.subr.mxu0 0.0
        %625 = vmatpush1.msra.mxu0 0.0
        %626 = vmatprep.subr.mxu0 0.0
        %627 = vmatpush1.msra.mxu0 0.0
        %628 = vmatprep.subr.mxu0 0.0
        %629 = vmatpush1.msra.mxu0 0.0
        %630 = vmatprep.subr.mxu0 0.0
        %631 = vmatpush1.msra.mxu0 0.0
        %632 = vmatprep.subr.mxu0 0.0
        %633 = vmatpush1.msra.mxu0 0.0
        %634 = vmatprep.subr.mxu0 0.0
        %635 = vmatpush1.msra.mxu0 0.0
        %636 = vmatprep.subr.mxu0 0.0
        %637 = vmatpush1.msra.mxu0 0.0
        %638 = vmatprep.subr.mxu0 0.0
        %639 = vmatpush1.msra.mxu0 0.0
        %640 = vmatprep.subr.mxu0 0.0
        %641 = vmatpush1.msra.mxu0 0.0
        %642 = vmatprep.subr.mxu0 0.0
        %643 = vmatpush1.msra.mxu0 0.0
        %644 = vmatprep.subr.mxu0 0.0
        %645 = vmatpush1.msra.mxu0 0.0
        %646 = vmatprep.subr.mxu0 0.0
        %647 = vmatpush1.msra.mxu0 0.0
        %648 = vmatprep.mubr.f32.mxu0 0.0
        %649 = vmatmul.mubr.f32.gmra.mrb[0].mxu0 %v557
        %v650 = vpop.f32.mrb[0].mxu0
        %v651 = vadd.f32 %v553, %v650
        %v652 = vpop.f32.mrb[0].mxu0
        %653 = vmatprep.mubr.f32.mxu0 0.0
        %654 = vmatmul.mubr.f32.gmra.mrb[0].mxu0 %v560
        %v655 = vpop.f32.mrb[0].mxu0
        %v656 = vadd.f32 %v553, %v655
        %v657 = vpop.f32.mrb[0].mxu0
        %658 = vmatprep.mubr.f32.mxu0 0.0
        %659 = vmatmul.mubr.f32.gmra.mrb[0].mxu0 %v563
        %v660 = vpop.f32.mrb[0].mxu0
        %v661 = vadd.f32 %v553, %v660
        %v662 = vpop.f32.mrb[0].mxu0
        %663 = vmatprep.mubr.f32.mxu0 0.0
        %664 = vmatmul.mubr.f32.gmra.mrb[0].mxu0 %v566
        %v665 = vpop.f32.mrb[0].mxu0
        %v666 = vadd.f32 %v553, %v665
        %v667 = vpop.f32.mrb[0].mxu0
        %668 = vmatprep.mubr.f32.mxu0 0.0
        %669 = vmatmul.mubr.f32.gmra.mrb[0].mxu0 %v569
        %v670 = vpop.f32.mrb[0].mxu0
        %v671 = vadd.f32 %v553, %v670
        %v672 = vpop.f32.mrb[0].mxu0
        %673 = vmatprep.mubr.f32.mxu0 0.0
        %674 = vmatmul.mubr.f32.gmra.mrb[0].mxu0 %v572
        %v675 = vpop.f32.mrb[0].mxu0
        %v676 = vadd.f32 %v553, %v675
        %v677 = vpop.f32.mrb[0].mxu0
        %678 = vmatprep.mubr.f32.mxu0 0.0
        %679 = vmatmul.mubr.f32.gmra.mrb[0].mxu0 %v575
        %v680 = vpop.f32.mrb[0].mxu0
        %v681 = vadd.f32 %v553, %v680
        %v682 = vpop.f32.mrb[0].mxu0
        %683 = vmatprep.mubr.f32.mxu0 0.0
        %684 = vmatmul.mubr.f32.gmra.mrb[0].mxu0 %v578
        %v685 = vpop.f32.mrb[0].mxu0
        %v686 = vadd.f32 %v553, %v685
        %v687 = vpop.f32.mrb[0].mxu0
        %688 = vdwg.mxu0
        %689 = vxpose.xlu0.b32.start [1/16] %v651, 128
        %690 = vxpose.xlu0.b32.cont [2/16] %v656, 128
        %691 = vxpose.xlu0.b32.cont [3/16] %v661, 128
        %692 = vxpose.xlu0.b32.cont [4/16] %v666, 128
        %693 = vxpose.xlu0.b32.cont [5/16] %v671, 128
        %694 = vxpose.xlu0.b32.cont [6/16] %v676, 128
        %695 = vxpose.xlu0.b32.cont [7/16] %v681, 128
        %696 = vxpose.xlu0.b32.cont [8/16] %v686, 128
        %697 = vxpose.xlu0.b32.cont [9/16] 0.0, 128
        %698 = vxpose.xlu0.b32.cont [10/16] 0.0, 128
        %699 = vxpose.xlu0.b32.cont [11/16] 0.0, 128
        %700 = vxpose.xlu0.b32.cont [12/16] 0.0, 128
        %701 = vxpose.xlu0.b32.cont [13/16] 0.0, 128
        %702 = vxpose.xlu0.b32.cont [14/16] 0.0, 128
        %703 = vxpose.xlu0.b32.cont [15/16] 0.0, 128
        %704 = vxpose.xlu0.b32.end [16/16] 0.0, 128
        %v705 = vpop.trf.xlu0
        %v706 = vpop.trf.xlu0
        %v707 = vpop.trf.xlu0
        %v708 = vpop.trf.xlu0
        %v709 = vpop.trf.xlu0
        %v710 = vpop.trf.xlu0
        %v711 = vpop.trf.xlu0
        %v712 = vpop.trf.xlu0
        %v713 = vpop.trf.xlu0
        %v714 = vpop.trf.xlu0
        %v715 = vpop.trf.xlu0
        %v716 = vpop.trf.xlu0
        %v717 = vpop.trf.xlu0
        %v718 = vpop.trf.xlu0
        %v719 = vpop.trf.xlu0
        %v720 = vpop.trf.xlu0
        %vm721 = vcmask 523264
        %722 = vst.msk [vmem:[%s223] sm:$0xff] %vm721, %v705
        %s723 = sand.u32 %s128, 1
        %s724 = scalar_lea.sflag [#allocation4], %s723
        %s725 = sand.u32 %s128, 1
        %s726 = smul.addr %s725, 8
        %s727 = scalar_lea.vmem [#allocation3], %s726
        // Predicated region
        $region41: #{tpu_custom_call.1} parent=31 // pred_check
          %p728 = pneg %p138
        $region42: #{tpu_custom_call.1} parent=31 // pred_check_branch
          %730 = sbr.rel (%p728) target = $region44
        $region43: #{tpu_custom_call.1} parent=31 // pred_region
          %s732 = ssub.s32 128, 128
          %733 = vsyncadd %s724, %s732
          %s734 = sadd.s32 %s23, %s24
          %s735 = sadd.s32 %s734, %s22
          %s736 = smul.addr %s735, 128
          %s737 = scalar_lea.hbm %s3, %s736
          %s739 = sshll.u32 %s727, 4
          %s740 = int_to_ptr.vmem [resolvable:$true] %s739
          %742 = dma.vmem_to_hbm [thread:$0]  %s740, 128, %s737, %s724
        $region44: #{tpu_custom_call.1} parent=31 // pred_fallthru
          _
      $region32: #{tpu_custom_call.1} parent=5 // pred_fallthru
        _
      %p743 = scmp.le.s32.totalorder 2, %s12
      // Predicated region
      $region45: #{tpu_custom_call.1} parent=5 // pred_check
        %p744 = pneg %p743
      $region46: #{tpu_custom_call.1} parent=5 // pred_check_branch
        %746 = sbr.rel (%p744) target = $region48
      $region47: #{tpu_custom_call.1} parent=5 // pred_region
        %s747 = ssub.s32 %s12, 2
        // Predicated region
        $region49: #{tpu_custom_call.1} parent=47 // pred_check
          %p748 = pneg %p144
        $region50: #{tpu_custom_call.1} parent=47 // pred_check_branch
          %750 = sbr.rel (%p748) target = $region52
        $region51: #{tpu_custom_call.1} parent=47 // pred_region
          %s751 = sand.u32 %s129, 1
          %s752 = scalar_lea.sflag [#allocation4], %s751
          %s753 = sand.u32 %s129, 1
          %s754 = smul.addr %s753, 8
          %s755 = scalar_lea.vmem [#allocation3], %s754
          %756 = dma.done %s752, 128
        $region52: #{tpu_custom_call.1} parent=47 // pred_fallthru
          _
      $region48: #{tpu_custom_call.1} parent=5 // pred_fallthru
        _
    $region6: #{tpu_custom_call.1} parent=1 // loop_footer
      %s16 = sadd.s32 1, %s12
    $region7: #{tpu_custom_call.1} parent=1 // loop_footer_branch
      %11 = sbr.rel target = $region3
    $region8: #{tpu_custom_call.1} parent=1 // loop_exit
      _
    %757 = vsyncpa [#allocation4], 1
    %s758 = scalar_lea.sflag [#allocation4], 1
    %759 = vsyncpa %s758, 1

</llo_original>
